<compile_context>
chip_gen: v7x
topology: tpu7x:2x2x1
jax: 0.10.0
libtpu: 0.0.40
codegen_flags: <defaults>
</compile_context>

<pallas_src>
import math

import jax
import jax.numpy as jnp
from jax.experimental import pallas as pl
from jax.experimental.pallas import tpu as pltpu


def _downsample_a_kernel(x_ref, sel_ref, o_ref):
    # x_ref:   (tb * r0, K)   folded input rows (even+odd H rows interleaved along lanes)
    # sel_ref: (K, L)         block-diagonal 0/1 selection (even H row, even W columns)
    # o_ref:   (tb, 2*r0, L)  flat per-image output: rows [0, r0) data, rows [r0, 2*r0) zeros
    tb, two_r0, l = o_ref.shape
    r0 = two_r0 // 2

    # Even-H / even-W selection on the MXU; one 1.0*x product per output -> exact in any dtype.
    res = jnp.dot(x_ref[...], sel_ref[...], preferred_element_type=jnp.float32)

    # Layout no-op whenever r0 % 8 == 0 (guaranteed by _pick_fold for the real CIFAR shapes).
    o_ref[:, :r0, :] = res.reshape(tb, r0, l).astype(o_ref.dtype)
    o_ref[:, r0:, :] = jnp.zeros((tb, r0, l), dtype=o_ref.dtype)   # the x.mul(0) half


def _round_up(a, b):
    return (a + b - 1) // b * b


def _pick_fold(c, ho, w, wo, itemsize):
    """Fold factor k: how many (channel, output-row) pairs share one lane row."""
    ch = c * ho
    cands = []
    for k in range(1, ch + 1):
        if ch % k:
            continue
        l = k * wo
        sel_bytes = _round_up(2 * w * k, 8) * _round_up(l, 128) * itemsize
        if l > 512 or sel_bytes > (4 << 20):
            break
        cands.append(k)
    if not cands:
        cands = [1]

    def score(k):
        l = k * wo
        r0 = ch // k
        # 1) keep the in-kernel reshape a layout no-op, 2) lane-dense (128-mult) stores,
        # 3) prefer L near 128 so sel / the contraction depth stay small.
        return (r0 % 8 == 0, l % 128 == 0, -abs(l - 128))

    return max(cands, key=score)


def _pick_batch_tile(n, r0, per_image_bytes, budget_bytes):
    """Images per grid step: VMEM-capped, sublane-aligned, >= 4 grid steps when possible."""
    align = 8 // math.gcd(r0, 8)          # keep the input block's sublane dim 8-aligned
    if n <= align:
        return n                          # full-extent block is always legal
    cap = max(1, budget_bytes // max(per_image_bytes, 1))
    target = -(-n // 4)                   # aim for >= 4 steps (v7x megacore + DMA overlap)
    tb = min(cap, target, n)
    tb = max(align, (tb // align) * align)
    return tb


def _vmem_budget_and_limit():
    phys = 64 << 20                       # assume the smallest (v7x per-core) if unknown
    try:
        info = pltpu.get_tpu_info()
        phys = int(getattr(info, "vmem_capacity_bytes", phys)) or phys
    except Exception:
        pass
    budget = min(phys * 3 // 8, 48 << 20)  # block working set: ~48 MiB v5e/v6e, ~24 MiB v7x
    limit = min(phys * 3 // 4, 96 << 20)   # scoped-VMEM limit handed to Mosaic
    return int(budget), int(limit)


def downsample_a(x):
    """DownsampleA forward. x: (N, C, H, W), even H and W -> (N, 2C, H//2, W//2)."""
    n, c, h, w = x.shape
    assert h % 2 == 0 and w % 2 == 0, "even spatial dims expected (stride=2, k=1)"
    # TODO(synk): odd spatial sizes (PyTorch gives ceil(H/2) x ceil(W/2)) are not handled.
    ho, wo = h // 2, w // 2
    itemsize = x.dtype.itemsize

    k = _pick_fold(c, ho, w, wo, itemsize)
    r0 = (c * ho) // k          # folded rows per image (input) == data rows per image (output)
    kk = 2 * w * k              # input lanes per folded row ([even H row | odd H row] * k)
    l = wo * k                  # output lanes per row

    # Free metadata view: k (c, ho) pairs per row, each contributing its even+odd H rows.
    # TODO(synk): the odd H rows are still DMA'd (then never read). Skipping them needs either
    # a (., 1, W) BlockSpec (violates the (8,128) block rule on an extent-2 dim) or a manual
    # strided DMA with only W*itemsize-byte chunks (memory_space=pl.ANY); not worth the risk.
    x_rows = x.reshape(n * r0, kk)

    # Block-diagonal selection matrix: even-W columns of the even-H row of each pair.
    j = jnp.arange(kk)[:, None]
    m = jnp.arange(l)[None, :]
    sel = ((j // (2 * w) == m // wo) & (j % (2 * w) == 2 * (m % wo))).astype(x.dtype)

    budget, limit = _vmem_budget_and_limit()
    lanes_in = _round_up(kk, 128)
    lanes_out = _round_up(l, 128)
    sel_bytes = 2 * _round_up(kk, 8) * lanes_out * itemsize
    per_image = (2 * r0 * lanes_in * itemsize         # double-buffered input block
                 + 2 * 2 * r0 * lanes_out * itemsize  # double-buffered output block
                 + r0 * lanes_out * 4)                # f32 matmul result
    tb = _pick_batch_tile(n, r0, per_image, max(budget - sel_bytes, per_image))
    steps = pl.cdiv(n, tb)

    out3 = pl.pallas_call(
        _downsample_a_kernel,
        out_shape=jax.ShapeDtypeStruct((n, 2 * r0, l), x.dtype),
        grid_spec=pltpu.PrefetchScalarGridSpec(
            num_scalar_prefetch=0,
            grid=(steps,),
            in_specs=[
                pl.BlockSpec((tb * r0, kk), lambda i: (i, 0)),
                pl.BlockSpec((kk, l), lambda i: (0, 0)),      # resident, fetched once
            ],
            out_specs=pl.BlockSpec((tb, 2 * r0, l), lambda i: (i, 0, 0)),
        ),
        compiler_params=pltpu.CompilerParams(
            dimension_semantics=("parallel",),
            vmem_limit_bytes=limit,
        ),
        cost_estimate=pl.CostEstimate(
            flops=2 * n * r0 * kk * l,
            transcendentals=0,
            bytes_accessed=int((x.size + sel.size + n * 2 * r0 * l) * itemsize),
        ),
    )(x_rows, sel)

    # Metadata-only reshape back to NCHW; first C channels = subsample, last C = zeros.
    return out3.reshape(n, 2 * c, ho, wo)


def _reference(x):
    sub = x[:, :, ::2, ::2]
    return jnp.concatenate([sub, jnp.zeros_like(sub)], axis=1)


if __name__ == "__main__":
    # DownsampleA has no learnable parameters (nIn/nOut are shape bookkeeping only).
    # Shapes match the real CIFAR-ResNet usage (nIn=16 -> nOut=32 at 32x32, stride 2).
    key = jax.random.PRNGKey(0)
    N, C, H, W = 8, 16, 32, 32
    x = jax.random.normal(key, (N, C, H, W), dtype=jnp.float32)

    out = jax.block_until_ready(downsample_a(x))
    ref = _reference(x)

    assert out.shape == (N, 2 * C, H // 2, W // 2), out.shape
    assert out.dtype == x.dtype
    assert jnp.allclose(out, ref), "mismatch vs reference"

    print("KERNEL_OK")
</pallas_src>

<mosaic_0001>
module attributes {stable_mosaic.version = 11 : i64} {
  func.func @_downsample_a_kernel(%arg0: i32, %arg1: memref<64x512xf32, #tpu.memory_space<vmem>>, %arg2: memref<512x128xf32, #tpu.memory_space<vmem>>, %arg3: memref<2x64x128xf32, #tpu.memory_space<vmem>>) attributes {dimension_semantics = [#tpu.dimension_semantics<parallel>], iteration_bounds = array<i64: 4>, scalar_prefetch = 0 : i64, scratch_operands = 0 : i64, tpu.core_type = #tpu.core_type<tc>, window_params = [{transform_indices = @transform_0, window_bounds = array<i64: 64, 512>}, {pipeline_mode = #tpu.pipeline_mode<synchronous>, transform_indices = @transform_1, window_bounds = array<i64: 512, 128>}, {transform_indices = @transform_2, window_bounds = array<i64: 2, 64, 128>}]} {
    %c0 = arith.constant 0 : index
    %c0_0 = arith.constant 0 : index
    %0 = vector.load %arg1[%c0, %c0_0] : memref<64x512xf32, #tpu.memory_space<vmem>>, vector<64x512xf32>
    %c0_1 = arith.constant 0 : index
    %c0_2 = arith.constant 0 : index
    %1 = vector.load %arg2[%c0_1, %c0_2] : memref<512x128xf32, #tpu.memory_space<vmem>>, vector<512x128xf32>
    %cst = arith.constant dense<0.000000e+00> : vector<64x128xf32>
    %2 = tpu.matmul %0, %1, %cst {dimension_numbers = #tpu.dot_dimension_numbers<[1], [0], [0], [1], [0, 0, 1, 1], [], []>} : vector<64x512xf32>, vector<512x128xf32>, vector<64x128xf32> -> vector<64x128xf32>
    %3 = vector.shape_cast %2 : vector<64x128xf32> to vector<2x32x128xf32>
    %c0_3 = arith.constant 0 : index
    %c0_4 = arith.constant 0 : index
    %c0_5 = arith.constant 0 : index
    %4 = vector.load %arg3[%c0_3, %c0_4, %c0_5] : memref<2x64x128xf32, #tpu.memory_space<vmem>>, vector<2x32x128xf32>
    tpu.vector_store %arg3[%c0_3, %c0_4, %c0_5], %3 {strides = array<i32>} : memref<2x64x128xf32, #tpu.memory_space<vmem>>, vector<2x32x128xf32>,
    %cst_6 = arith.constant 0.000000e+00 : f32
    %5 = vector.broadcast %cst_6 : f32 to vector<2x32x128xf32>
    %c0_7 = arith.constant 0 : index
    %c32 = arith.constant 32 : index
    %c0_8 = arith.constant 0 : index
    %6 = vector.load %arg3[%c0_7, %c32, %c0_8] : memref<2x64x128xf32, #tpu.memory_space<vmem>>, vector<2x32x128xf32>
    tpu.vector_store %arg3[%c0_7, %c32, %c0_8], %5 {strides = array<i32>} : memref<2x64x128xf32, #tpu.memory_space<vmem>>, vector<2x32x128xf32>,
    return
  }
  func.func @transform_0(%arg0: i32) -> (i32, i32) {
    %c0_i32 = arith.constant 0 : i32
    %c0_i32_0 = arith.constant 0 : i32
    return %arg0, %c0_i32 : i32, i32
  }
  func.func @transform_1(%arg0: i32) -> (i32, i32) {
    %c0_i32 = arith.constant 0 : i32
    %c0_i32_0 = arith.constant 0 : i32
    %c0_i32_1 = arith.constant 0 : i32
    return %c0_i32, %c0_i32_0 : i32, i32
  }
  func.func @transform_2(%arg0: i32) -> (i32, i32, i32) {
    %c0_i32 = arith.constant 0 : i32
    %c0_i32_0 = arith.constant 0 : i32
    %c0_i32_1 = arith.constant 0 : i32
    return %arg0, %c0_i32, %c0_i32_0 : i32, i32, i32
  }
}

</mosaic_0001>

<llo_original>
// kernel: tpu_custom_call.1
$region0: #{tpu_custom_call.1}
  #allocation0 [shape = 'u32[]', space=smem, size = 0x4, offset = 0x4, fixed_abs, tag = 'smem constant byte address 0x4 - core index']
  #allocation1 [shape = 'u32[144,128]{1,0:T(1,128)}', space=vmem, size = 0x12000, scoped, tag = 'internal scratch']
  %s0 = inlined_call_operand.hbm [shape: f32[256,512], index: 0, kind: input, shape index: {}]
  %s1 = inlined_call_operand.hbm [shape: f32[512,128], index: 1, kind: input, shape index: {}]
  %s2 = inlined_call_operand.hbm [shape: f32[8,64,128], index: 2, kind: output, shape index: {}]
  %s3 = sld [smem:[#allocation0]]
  $region49: #{tpu_custom_call.1} parent=0
    _
  %s5 = ssub.s32 1, %s3
  %s6 = scalar_select 0, %s5, %s3
  $region1: #{tpu_custom_call.1} parent=0
    #allocation2 [shape = 'u8[262144]{0}', space=vmem, size = 0x40000, scoped, tag = 'input window, operand 0']
    #allocation3 [shape = 's32[2]{0}', space=sflag, size = 0x8, scoped, tag = 'scoped memory for tpu_custom_call.1']
    #allocation4 [shape = 's32[2]{0}', space=sflag, size = 0x8, scoped, tag = 'scoped memory for tpu_custom_call.1']
    #allocation5 [shape = 'u8[262144]{0}', space=vmem, size = 0x40000, scoped, tag = 'input window, operand 1, single buffered']
    #allocation6 [shape = 's32[1]{0}', space=sflag, size = 0x4, scoped, tag = 'scoped memory for tpu_custom_call.1']
    #allocation7 [shape = 'u8[131072]{0}', space=vmem, size = 0x20000, scoped, tag = 'output window, operand 0']
    %7 = vsyncpa [#allocation3], 0
    %s8 = scalar_lea.sflag [#allocation3], 1
    %9 = vsyncpa %s8, 0
    %10 = vsyncpa [#allocation6], 0
    %11 = vsyncpa [#allocation4], 0
    %s12 = scalar_lea.sflag [#allocation4], 1
    %13 = vsyncpa %s12, 0
    loop: start=0, step=1, limit=6
    $region2: #{tpu_custom_call.1} parent=1 // loop_pre_header
      _
    $region3: #{tpu_custom_call.1} parent=1 // loop_header
      %s15 = sphi 0, %s19
      %p16 = scmp.ge.s32.totalorder %s15, 6
      %s25 = sphi 0, %s27
      %s28 = sphi 0, %s25
      %s29 = sphi 0, %s28
      %s45 = sphi 0, %s29
      %s49 = sphi 0, %s49
      %s51 = sphi 0, %s49
      %s52 = sphi 0, %s51
      %s66 = sphi 0, %s52
      %s72 = sphi 0, %s74
      %s75 = sphi 0, %s72
      %s76 = sphi 0, %s75
      %s92 = sphi 0, %s76
    $region4: #{tpu_custom_call.1} parent=1 // loop_header_branch
      %18 = sbr.rel (%p16) target = $region8
    $region5: #{tpu_custom_call.1} parent=1 // loop_body
      %s20 = ssub.s32 %s15, 1
      %s21 = ssub.s32 %s15, 2
      %s22 = sadd.s32 %s15, 1
      %s23 = ssub.s32 %s15, %s22
      %p24 = scmp.eq.s32.totalorder %s23, 0
      %s26 = sadd.s32 %s25, 1
      %s27 = scalar_select %p24, %s25, %s26
      %p30 = pneg %p24
      %p31 = scmp.eq.s32.totalorder %s15, 3
      %p32 = por %p30, %p31
      %p33 = scmp.ne.s32.totalorder %s25, %s28
      %p34 = scmp.eq.s32.totalorder %s15, 0
      %p35 = por %p33, %p34
      %p36 = scmp.ne.s32.totalorder %s25, %s28
      %p37 = scmp.eq.s32.totalorder %s20, 3
      %p38 = por %p36, %p37
      %p39 = scmp.ne.s32.totalorder %s28, %s29
      %p40 = scmp.eq.s32.totalorder %s20, 0
      %p41 = por %p39, %p40
      %p42 = scmp.ne.s32.totalorder %s28, %s29
      %p43 = scmp.eq.s32.totalorder %s21, 3
      %p44 = por %p42, %p43
      %p46 = scmp.ne.s32.totalorder %s29, %s45
      %p47 = scmp.eq.s32.totalorder %s21, 0
      %p48 = por %p46, %p47
      %s50 = sadd.s32 %s49, 1
      %p53 = scmp.eq.s32.totalorder %s15, 3
      %p54 = scmp.ne.s32.totalorder %s49, %s51
      %p55 = scmp.eq.s32.totalorder %s15, 0
      %p56 = por %p54, %p55
      %p57 = scmp.ne.s32.totalorder %s49, %s51
      %p58 = scmp.eq.s32.totalorder %s20, 3
      %p59 = por %p57, %p58
      %p60 = scmp.ne.s32.totalorder %s51, %s52
      %p61 = scmp.eq.s32.totalorder %s20, 0
      %p62 = por %p60, %p61
      %p63 = scmp.ne.s32.totalorder %s51, %s52
      %p64 = scmp.eq.s32.totalorder %s21, 3
      %p65 = por %p63, %p64
      %p67 = scmp.ne.s32.totalorder %s52, %s66
      %p68 = scmp.eq.s32.totalorder %s21, 0
      %p69 = por %p67, %p68
      %s70 = ssub.s32 %s15, %s22
      %p71 = scmp.eq.s32.totalorder %s70, 0
      %s73 = sadd.s32 %s72, 1
      %s74 = scalar_select %p71, %s72, %s73
      %p77 = pneg %p71
      %p78 = scmp.eq.s32.totalorder %s15, 3
      %p79 = por %p77, %p78
      %p80 = scmp.ne.s32.totalorder %s72, %s75
      %p81 = scmp.eq.s32.totalorder %s15, 0
      %p82 = por %p80, %p81
      %p83 = scmp.ne.s32.totalorder %s72, %s75
      %p84 = scmp.eq.s32.totalorder %s20, 3
      %p85 = por %p83, %p84
      %p86 = scmp.ne.s32.totalorder %s75, %s76
      %p87 = scmp.eq.s32.totalorder %s20, 0
      %p88 = por %p86, %p87
      %p89 = scmp.ne.s32.totalorder %s75, %s76
      %p90 = scmp.eq.s32.totalorder %s21, 3
      %p91 = por %p89, %p90
      %p93 = scmp.ne.s32.totalorder %s76, %s92
      %p94 = scmp.eq.s32.totalorder %s21, 0
      %p95 = por %p93, %p94
      %p96 = scmp.le.s32.totalorder 1, %s15
      %p97 = scmp.lt.s32.totalorder %s15, 5
      %p98 = pnand %p96, %p97
      %p99 = pneg %p98
      // Predicated region
      $region9: #{tpu_custom_call.1} parent=5 // pred_check
        _
      $region10: #{tpu_custom_call.1} parent=5 // pred_check_branch
        %101 = sbr.rel (%p98) target = $region12
      $region11: #{tpu_custom_call.1} parent=5 // pred_region
        %s102 = ssub.s32 %s15, 1
        // Predicated region
        $region13: #{tpu_custom_call.1} parent=11 // pred_check
          %p103 = pneg %p62
        $region14: #{tpu_custom_call.1} parent=11 // pred_check_branch
          %105 = sbr.rel (%p103) target = $region16
        $region15: #{tpu_custom_call.1} parent=11 // pred_region
          %s107 = ssub.s32 8192, 8192
          %108 = vsyncadd [#allocation6], %s107
          %s109 = sshll.u32 [#allocation5], 4
          %s110 = int_to_ptr.vmem [resolvable:$true] %s109
          %115 = dma.hbm_to_vmem [thread:$0]  %s1, 8192, %s110, [#allocation6], 128, 128, 8
        $region16: #{tpu_custom_call.1} parent=11 // pred_fallthru
          _
      $region12: #{tpu_custom_call.1} parent=5 // pred_fallthru
        _
      %p116 = scmp.lt.s32.totalorder %s15, 4
      // Predicated region
      $region17: #{tpu_custom_call.1} parent=5 // pred_check
        %p117 = pneg %p116
      $region18: #{tpu_custom_call.1} parent=5 // pred_check_branch
        %119 = sbr.rel (%p117) target = $region20
      $region19: #{tpu_custom_call.1} parent=5 // pred_region
        // Predicated region
        $region21: #{tpu_custom_call.1} parent=19 // pred_check
          %p120 = pneg %p35
        $region22: #{tpu_custom_call.1} parent=19 // pred_check_branch
          %122 = sbr.rel (%p120) target = $region24
        $region23: #{tpu_custom_call.1} parent=19 // pred_region
          %s123 = sand.u32 %s25, 1
          %s124 = scalar_lea.sflag [#allocation3], %s123
          %s125 = sand.u32 %s25, 1
          %s126 = smul.addr %s125, 256
          %s127 = scalar_lea.vmem [#allocation2], %s126
          %s128 = smul.u32 8, %s15
          %s130 = ssub.s32 4096, 4096
          %131 = vsyncadd %s124, %s130
          %s132 = smul.addr %s128, 4
          %s133 = smul.addr %s132, 128
          %s134 = scalar_lea.hbm %s0, %s133
          %s135 = sshll.u32 %s127, 4
          %s136 = int_to_ptr.vmem [resolvable:$true] %s135
          %141 = dma.hbm_to_vmem [thread:$0]  %s134, 4096, %s136, %s124, 512, 512, 32
        $region24: #{tpu_custom_call.1} parent=19 // pred_fallthru
          _
      $region20: #{tpu_custom_call.1} parent=5 // pred_fallthru
        _
      %p142 = scmp.le.s32.totalorder 1, %s15
      %p143 = scmp.lt.s32.totalorder %s15, 5
      %p144 = pnand %p142, %p143
      %p145 = pneg %p144
      // Predicated region
      $region25: #{tpu_custom_call.1} parent=5 // pred_check
        _
      $region26: #{tpu_custom_call.1} parent=5 // pred_check_branch
        %147 = sbr.rel (%p144) target = $region28
      $region27: #{tpu_custom_call.1} parent=5 // pred_region
        %s148 = ssub.s32 %s15, 1
        %s149 = sand.u32 %s28, 1
        %s150 = scalar_lea.sflag [#allocation3], %s149
        %s151 = sand.u32 %s28, 1
        %s152 = smul.addr %s151, 256
        %s153 = scalar_lea.vmem [#allocation2], %s152
        // Predicated region
        $region29: #{tpu_custom_call.1} parent=27 // pred_check
          %p154 = pneg %p41
        $region30: #{tpu_custom_call.1} parent=27 // pred_check_branch
          %156 = sbr.rel (%p154) target = $region32
        $region31: #{tpu_custom_call.1} parent=27 // pred_region
          %157 = dma.done %s150, 4096
        $region32: #{tpu_custom_call.1} parent=27 // pred_fallthru
          _
        // Predicated region
        $region33: #{tpu_custom_call.1} parent=27 // pred_check
          %p158 = pneg %p62
        $region34: #{tpu_custom_call.1} parent=27 // pred_check_branch
          %160 = sbr.rel (%p158) target = $region36
        $region35: #{tpu_custom_call.1} parent=27 // pred_region
          %161 = dma.done [#allocation6], 8192
        $region36: #{tpu_custom_call.1} parent=27 // pred_fallthru
          _
        %s162 = sand.u32 %s28, 1
        %s163 = scalar_lea.sflag [#allocation3], %s162
        %s164 = sand.u32 %s28, 1
        %s165 = smul.addr %s164, 256
        %s166 = scalar_lea.vmem [#allocation2], %s165
        %p167 = pneg %p41
        %p168 = pneg %p38
        %p169 = pneg %p62
        %p170 = pneg %p59
        %p171 = pneg %p88
        %p172 = pneg %p85
        %s173 = sand.u32 %s75, 1
        %s174 = scalar_lea.sflag [#allocation4], %s173
        %s175 = sand.u32 %s75, 1
        %s176 = smul.addr %s175, 128
        %s177 = scalar_lea.vmem [#allocation7], %s176
        %s178 = smul.u32 8, %s20
        %s179 = smul.u32 2, %s20
        %v180 = vld [vmem:[%s153] sm:$0xff]
        %v181 = vld [vmem:[%s153 + $0x8] sm:$0xff]
        %v182 = vld [vmem:[%s153 + $0x10] sm:$0xff]
        %v183 = vld [vmem:[%s153 + $0x18] sm:$0xff]
        %v184 = vld [vmem:[%s153 + $0x20] sm:$0xff]
        %v185 = vld [vmem:[%s153 + $0x28] sm:$0xff]
        %v186 = vld [vmem:[%s153 + $0x30] sm:$0xff]
        %v187 = vld [vmem:[%s153 + $0x38] sm:$0xff]
        %v188 = vld [vmem:[%s153 + $0x40] sm:$0xff]
        %v189 = vld [vmem:[%s153 + $0x48] sm:$0xff]
        %v190 = vld [vmem:[%s153 + $0x50] sm:$0xff]
        %v191 = vld [vmem:[%s153 + $0x58] sm:$0xff]
        %v192 = vld [vmem:[%s153 + $0x60] sm:$0xff]
        %v193 = vld [vmem:[%s153 + $0x68] sm:$0xff]
        %v194 = vld [vmem:[%s153 + $0x70] sm:$0xff]
        %v195 = vld [vmem:[%s153 + $0x78] sm:$0xff]
        %v196 = vld [vmem:[%s153 + $0x80] sm:$0xff]
        %v197 = vld [vmem:[%s153 + $0x88] sm:$0xff]
        %v198 = vld [vmem:[%s153 + $0x90] sm:$0xff]
        %v199 = vld [vmem:[%s153 + $0x98] sm:$0xff]
        %v200 = vld [vmem:[%s153 + $0xa0] sm:$0xff]
        %v201 = vld [vmem:[%s153 + $0xa8] sm:$0xff]
        %v202 = vld [vmem:[%s153 + $0xb0] sm:$0xff]
        %v203 = vld [vmem:[%s153 + $0xb8] sm:$0xff]
        %v204 = vld [vmem:[%s153 + $0xc0] sm:$0xff]
        %v205 = vld [vmem:[%s153 + $0xc8] sm:$0xff]
        %v206 = vld [vmem:[%s153 + $0xd0] sm:$0xff]
        %v207 = vld [vmem:[%s153 + $0xd8] sm:$0xff]
        %v208 = vld [vmem:[%s153 + $0xe0] sm:$0xff]
        %v209 = vld [vmem:[%s153 + $0xe8] sm:$0xff]
        %v210 = vld [vmem:[%s153 + $0xf0] sm:$0xff]
        %v211 = vld [vmem:[%s153 + $0xf8] sm:$0xff]
        %v212 = vld [vmem:[#allocation5] sm:$0xff]
        %v213 = vld [vmem:[#allocation5 + $0x8] sm:$0xff]
        %v214 = vld [vmem:[#allocation5 + $0x10] sm:$0xff]
        %v215 = vld [vmem:[#allocation5 + $0x18] sm:$0xff]
        %v216 = vld [vmem:[#allocation5 + $0x20] sm:$0xff]
        %v217 = vld [vmem:[#allocation5 + $0x28] sm:$0xff]
        %v218 = vld [vmem:[#allocation5 + $0x30] sm:$0xff]
        %v219 = vld [vmem:[#allocation5 + $0x38] sm:$0xff]
        %v220 = vld [vmem:[#allocation5 + $0x40] sm:$0xff]
        %v221 = vld [vmem:[#allocation5 + $0x48] sm:$0xff]
        %v222 = vld [vmem:[#allocation5 + $0x50] sm:$0xff]
        %v223 = vld [vmem:[#allocation5 + $0x58] sm:$0xff]
        %v224 = vld [vmem:[#allocation5 + $0x60] sm:$0xff]
        %v225 = vld [vmem:[#allocation5 + $0x68] sm:$0xff]
        %v226 = vld [vmem:[#allocation5 + $0x70] sm:$0xff]
        %v227 = vld [vmem:[#allocation5 + $0x78] sm:$0xff]
        %v228 = vld [vmem:[#allocation5 + $0x80] sm:$0xff]
        %v229 = vld [vmem:[#allocation5 + $0x88] sm:$0xff]
        %v230 = vld [vmem:[#allocation5 + $0x90] sm:$0xff]
        %v231 = vld [vmem:[#allocation5 + $0x98] sm:$0xff]
        %v232 = vld [vmem:[#allocation5 + $0xa0] sm:$0xff]
        %v233 = vld [vmem:[#allocation5 + $0xa8] sm:$0xff]
        %v234 = vld [vmem:[#allocation5 + $0xb0] sm:$0xff]
        %v235 = vld [vmem:[#allocation5 + $0xb8] sm:$0xff]
        %v236 = vld [vmem:[#allocation5 + $0xc0] sm:$0xff]
        %v237 = vld [vmem:[#allocation5 + $0xc8] sm:$0xff]
        %v238 = vld [vmem:[#allocation5 + $0xd0] sm:$0xff]
        %v239 = vld [vmem:[#allocation5 + $0xd8] sm:$0xff]
        %v240 = vld [vmem:[#allocation5 + $0xe0] sm:$0xff]
        %v241 = vld [vmem:[#allocation5 + $0xe8] sm:$0xff]
        %v242 = vld [vmem:[#allocation5 + $0xf0] sm:$0xff]
        %v243 = vld [vmem:[#allocation5 + $0xf8] sm:$0xff]
        %v244 = vld [vmem:[#allocation5 + $0x100] sm:$0xff]
        %v245 = vld [vmem:[#allocation5 + $0x108] sm:$0xff]
        %v246 = vld [vmem:[#allocation5 + $0x110] sm:$0xff]
        %v247 = vld [vmem:[#allocation5 + $0x118] sm:$0xff]
        %v248 = vld [vmem:[#allocation5 + $0x120] sm:$0xff]
        %v249 = vld [vmem:[#allocation5 + $0x128] sm:$0xff]
        %v250 = vld [vmem:[#allocation5 + $0x130] sm:$0xff]
        %v251 = vld [vmem:[#allocation5 + $0x138] sm:$0xff]
        %v252 = vld [vmem:[#allocation5 + $0x140] sm:$0xff]
        %v253 = vld [vmem:[#allocation5 + $0x148] sm:$0xff]
        %v254 = vld [vmem:[#allocation5 + $0x150] sm:$0xff]
        %v255 = vld [vmem:[#allocation5 + $0x158] sm:$0xff]
        %v256 = vld [vmem:[#allocation5 + $0x160] sm:$0xff]
        %v257 = vld [vmem:[#allocation5 + $0x168] sm:$0xff]
        %v258 = vld [vmem:[#allocation5 + $0x170] sm:$0xff]
        %v259 = vld [vmem:[#allocation5 + $0x178] sm:$0xff]
        %v260 = vld [vmem:[#allocation5 + $0x180] sm:$0xff]
        %v261 = vld [vmem:[#allocation5 + $0x188] sm:$0xff]
        %v262 = vld [vmem:[#allocation5 + $0x190] sm:$0xff]
        %v263 = vld [vmem:[#allocation5 + $0x198] sm:$0xff]
        %v264 = vld [vmem:[#allocation5 + $0x1a0] sm:$0xff]
        %v265 = vld [vmem:[#allocation5 + $0x1a8] sm:$0xff]
        %v266 = vld [vmem:[#allocation5 + $0x1b0] sm:$0xff]
        %v267 = vld [vmem:[#allocation5 + $0x1b8] sm:$0xff]
        %v268 = vld [vmem:[#allocation5 + $0x1c0] sm:$0xff]
        %v269 = vld [vmem:[#allocation5 + $0x1c8] sm:$0xff]
        %v270 = vld [vmem:[#allocation5 + $0x1d0] sm:$0xff]
        %v271 = vld [vmem:[#allocation5 + $0x1d8] sm:$0xff]
        %v272 = vld [vmem:[#allocation5 + $0x1e0] sm:$0xff]
        %v273 = vld [vmem:[#allocation5 + $0x1e8] sm:$0xff]
        %v274 = vld [vmem:[#allocation5 + $0x1f0] sm:$0xff]
        %v275 = vld [vmem:[#allocation5 + $0x1f8] sm:$0xff]
        %276 = vmatprep.subr.mxu0 0.0
        %277 = vmatpush1.msra.mxu0 %v212
        %278 = vmatprep.subr.mxu0 0.0
        %279 = vmatpush1.msra.mxu0 %v213
        %280 = vmatprep.subr.mxu0 0.0
        %281 = vmatpush1.msra.mxu0 %v214
        %282 = vmatprep.subr.mxu0 0.0
        %283 = vmatpush1.msra.mxu0 %v215
        %284 = vmatprep.subr.mxu0 0.0
        %285 = vmatpush1.msra.mxu0 %v216
        %286 = vmatprep.subr.mxu0 0.0
        %287 = vmatpush1.msra.mxu0 %v217
        %288 = vmatprep.subr.mxu0 0.0
        %289 = vmatpush1.msra.mxu0 %v218
        %290 = vmatprep.subr.mxu0 0.0
        %291 = vmatpush1.msra.mxu0 %v219
        %292 = vmatprep.subr.mxu0 0.0
        %293 = vmatpush1.msra.mxu0 %v220
        %294 = vmatprep.subr.mxu0 0.0
        %295 = vmatpush1.msra.mxu0 %v221
        %296 = vmatprep.subr.mxu0 0.0
        %297 = vmatpush1.msra.mxu0 %v222
        %298 = vmatprep.subr.mxu0 0.0
        %299 = vmatpush1.msra.mxu0 %v223
        %300 = vmatprep.subr.mxu0 0.0
        %301 = vmatpush1.msra.mxu0 %v224
        %302 = vmatprep.subr.mxu0 0.0
        %303 = vmatpush1.msra.mxu0 %v225
        %304 = vmatprep.subr.mxu0 0.0
        %305 = vmatpush1.msra.mxu0 %v226
        %306 = vmatprep.subr.mxu0 0.0
        %307 = vmatpush1.msra.mxu0 %v227
        %308 = vmatprep.subr.mxu0 0.0
        %309 = vmatpush1.msra.mxu0 %v228
        %310 = vmatprep.subr.mxu0 0.0
        %311 = vmatpush1.msra.mxu0 %v229
        %312 = vmatprep.subr.mxu0 0.0
        %313 = vmatpush1.msra.mxu0 %v230
        %314 = vmatprep.subr.mxu0 0.0
        %315 = vmatpush1.msra.mxu0 %v231
        %316 = vmatprep.subr.mxu0 0.0
        %317 = vmatpush1.msra.mxu0 %v232
        %318 = vmatprep.subr.mxu0 0.0
        %319 = vmatpush1.msra.mxu0 %v233
        %320 = vmatprep.subr.mxu0 0.0
        %321 = vmatpush1.msra.mxu0 %v234
        %322 = vmatprep.subr.mxu0 0.0
        %323 = vmatpush1.msra.mxu0 %v235
        %324 = vmatprep.subr.mxu0 0.0
        %325 = vmatpush1.msra.mxu0 %v236
        %326 = vmatprep.subr.mxu0 0.0
        %327 = vmatpush1.msra.mxu0 %v237
        %328 = vmatprep.subr.mxu0 0.0
        %329 = vmatpush1.msra.mxu0 %v238
        %330 = vmatprep.subr.mxu0 0.0
        %331 = vmatpush1.msra.mxu0 %v239
        %332 = vmatprep.subr.mxu0 0.0
        %333 = vmatpush1.msra.mxu0 %v240
        %334 = vmatprep.subr.mxu0 0.0
        %335 = vmatpush1.msra.mxu0 %v241
        %336 = vmatprep.subr.mxu0 0.0
        %337 = vmatpush1.msra.mxu0 %v242
        %338 = vmatprep.subr.mxu0 0.0
        %339 = vmatpush1.msra.mxu0 %v243
        %340 = vmatprep.mubr.f32.mxu0 %v181
        %341 = vmatmul.mubr.f32.gmra.mrb[0].mxu0 %v180
        %v342 = vpop.f32.mrb[0].mxu0
        %v343 = vadd.f32 0.0, %v342
        %v344 = vpop.f32.mrb[0].mxu0
        %345 = vmatprep.mubr.f32.mxu0 %v185
        %346 = vmatmul.mubr.f32.gmra.mrb[0].mxu0 %v184
        %v347 = vpop.f32.mrb[0].mxu0
        %v348 = vadd.f32 0.0, %v347
        %v349 = vpop.f32.mrb[0].mxu0
        %350 = vmatprep.mubr.f32.mxu0 %v189
        %351 = vmatmul.mubr.f32.gmra.mrb[0].mxu0 %v188
        %v352 = vpop.f32.mrb[0].mxu0
        %v353 = vadd.f32 0.0, %v352
        %v354 = vpop.f32.mrb[0].mxu0
        %355 = vmatprep.mubr.f32.mxu0 %v193
        %356 = vmatmul.mubr.f32.gmra.mrb[0].mxu0 %v192
        %v357 = vpop.f32.mrb[0].mxu0
        %v358 = vadd.f32 0.0, %v357
        %v359 = vpop.f32.mrb[0].mxu0
        %360 = vmatprep.mubr.f32.mxu0 %v197
        %361 = vmatmul.mubr.f32.gmra.mrb[0].mxu0 %v196
        %v362 = vpop.f32.mrb[0].mxu0
        %v363 = vadd.f32 0.0, %v362
        %v364 = vpop.f32.mrb[0].mxu0
        %365 = vmatprep.mubr.f32.mxu0 %v201
        %366 = vmatmul.mubr.f32.gmra.mrb[0].mxu0 %v200
        %v367 = vpop.f32.mrb[0].mxu0
        %v368 = vadd.f32 0.0, %v367
        %v369 = vpop.f32.mrb[0].mxu0
        %370 = vmatprep.mubr.f32.mxu0 %v205
        %371 = vmatmul.mubr.f32.gmra.mrb[0].mxu0 %v204
        %v372 = vpop.f32.mrb[0].mxu0
        %v373 = vadd.f32 0.0, %v372
        %v374 = vpop.f32.mrb[0].mxu0
        %375 = vmatprep.mubr.f32.mxu0 %v209
        %376 = vmatmul.mubr.f32.gmra.mrb[0].mxu0 %v208
        %v377 = vpop.f32.mrb[0].mxu0
        %v378 = vadd.f32 0.0, %v377
        %v379 = vpop.f32.mrb[0].mxu0
        %380 = vdwg.mxu0
        %381 = vmatprep.subr.mxu0 0.0
        %382 = vmatpush1.msra.mxu0 %v244
        %383 = vmatprep.subr.mxu0 0.0
        %384 = vmatpush1.msra.mxu0 %v245
        %385 = vmatprep.subr.mxu0 0.0
        %386 = vmatpush1.msra.mxu0 %v246
        %387 = vmatprep.subr.mxu0 0.0
        %388 = vmatpush1.msra.mxu0 %v247
        %389 = vmatprep.subr.mxu0 0.0
        %390 = vmatpush1.msra.mxu0 %v248
        %391 = vmatprep.subr.mxu0 0.0
        %392 = vmatpush1.msra.mxu0 %v249
        %393 = vmatprep.subr.mxu0 0.0
        %394 = vmatpush1.msra.mxu0 %v250
        %395 = vmatprep.subr.mxu0 0.0
        %396 = vmatpush1.msra.mxu0 %v251
        %397 = vmatprep.subr.mxu0 0.0
        %398 = vmatpush1.msra.mxu0 %v252
        %399 = vmatprep.subr.mxu0 0.0
        %400 = vmatpush1.msra.mxu0 %v253
        %401 = vmatprep.subr.mxu0 0.0
        %402 = vmatpush1.msra.mxu0 %v254
        %403 = vmatprep.subr.mxu0 0.0
        %404 = vmatpush1.msra.mxu0 %v255
        %405 = vmatprep.subr.mxu0 0.0
        %406 = vmatpush1.msra.mxu0 %v256
        %407 = vmatprep.subr.mxu0 0.0
        %408 = vmatpush1.msra.mxu0 %v257
        %409 = vmatprep.subr.mxu0 0.0
        %410 = vmatpush1.msra.mxu0 %v258
        %411 = vmatprep.subr.mxu0 0.0
        %412 = vmatpush1.msra.mxu0 %v259
        %413 = vmatprep.subr.mxu0 0.0
        %414 = vmatpush1.msra.mxu0 %v260
        %415 = vmatprep.subr.mxu0 0.0
        %416 = vmatpush1.msra.mxu0 %v261
        %417 = vmatprep.subr.mxu0 0.0
        %418 = vmatpush1.msra.mxu0 %v262
        %419 = vmatprep.subr.mxu0 0.0
        %420 = vmatpush1.msra.mxu0 %v263
        %421 = vmatprep.subr.mxu0 0.0
        %422 = vmatpush1.msra.mxu0 %v264
        %423 = vmatprep.subr.mxu0 0.0
        %424 = vmatpush1.msra.mxu0 %v265
        %425 = vmatprep.subr.mxu0 0.0
        %426 = vmatpush1.msra.mxu0 %v266
        %427 = vmatprep.subr.mxu0 0.0
        %428 = vmatpush1.msra.mxu0 %v267
        %429 = vmatprep.subr.mxu0 0.0
        %430 = vmatpush1.msra.mxu0 %v268
        %431 = vmatprep.subr.mxu0 0.0
        %432 = vmatpush1.msra.mxu0 %v269
        %433 = vmatprep.subr.mxu0 0.0
        %434 = vmatpush1.msra.mxu0 %v270
        %435 = vmatprep.subr.mxu0 0.0
        %436 = vmatpush1.msra.mxu0 %v271
        %437 = vmatprep.subr.mxu0 0.0
        %438 = vmatpush1.msra.mxu0 %v272
        %439 = vmatprep.subr.mxu0 0.0
        %440 = vmatpush1.msra.mxu0 %v273
        %441 = vmatprep.subr.mxu0 0.0
        %442 = vmatpush1.msra.mxu0 %v274
        %443 = vmatprep.subr.mxu0 0.0
        %444 = vmatpush1.msra.mxu0 %v275
        %445 = vmatprep.mubr.f32.mxu0 %v183
        %446 = vmatmul.mubr.f32.gmra.mrb[0].mxu0 %v182
        %v447 = vpop.f32.mrb[0].mxu0
        %v448 = vadd.f32 %v343, %v447
        %v449 = vpop.f32.mrb[0].mxu0
        %450 = vmatprep.mubr.f32.mxu0 %v187
        %451 = vmatmul.mubr.f32.gmra.mrb[0].mxu0 %v186
        %v452 = vpop.f32.mrb[0].mxu0
        %v453 = vadd.f32 %v348, %v452
        %v454 = vpop.f32.mrb[0].mxu0
        %455 = vmatprep.mubr.f32.mxu0 %v191
        %456 = vmatmul.mubr.f32.gmra.mrb[0].mxu0 %v190
        %v457 = vpop.f32.mrb[0].mxu0
        %v458 = vadd.f32 %v353, %v457
        %v459 = vpop.f32.mrb[0].mxu0
        %460 = vmatprep.mubr.f32.mxu0 %v195
        %461 = vmatmul.mubr.f32.gmra.mrb[0].mxu0 %v194
        %v462 = vpop.f32.mrb[0].mxu0
        %v463 = vadd.f32 %v358, %v462
        %v464 = vpop.f32.mrb[0].mxu0
        %465 = vmatprep.mubr.f32.mxu0 %v199
        %466 = vmatmul.mubr.f32.gmra.mrb[0].mxu0 %v198
        %v467 = vpop.f32.mrb[0].mxu0
        %v468 = vadd.f32 %v363, %v467
        %v469 = vpop.f32.mrb[0].mxu0
        %470 = vmatprep.mubr.f32.mxu0 %v203
        %471 = vmatmul.mubr.f32.gmra.mrb[0].mxu0 %v202
        %v472 = vpop.f32.mrb[0].mxu0
        %v473 = vadd.f32 %v368, %v472
        %v474 = vpop.f32.mrb[0].mxu0
        %475 = vmatprep.mubr.f32.mxu0 %v207
        %476 = vmatmul.mubr.f32.gmra.mrb[0].mxu0 %v206
        %v477 = vpop.f32.mrb[0].mxu0
        %v478 = vadd.f32 %v373, %v477
        %v479 = vpop.f32.mrb[0].mxu0
        %480 = vmatprep.mubr.f32.mxu0 %v211
        %481 = vmatmul.mubr.f32.gmra.mrb[0].mxu0 %v210
        %v482 = vpop.f32.mrb[0].mxu0
        %v483 = vadd.f32 %v378, %v482
        %v484 = vpop.f32.mrb[0].mxu0
        %485 = vdwg.mxu0
        %486 = vst [vmem:[%s177] sm:$0xff] %v448
        %487 = vst [vmem:[%s177 + $0x8] sm:$0xff] %v453
        %488 = vst [vmem:[%s177 + $0x10] sm:$0xff] %v458
        %489 = vst [vmem:[%s177 + $0x18] sm:$0xff] %v463
        %490 = vst [vmem:[%s177 + $0x40] sm:$0xff] %v468
        %491 = vst [vmem:[%s177 + $0x48] sm:$0xff] %v473
        %492 = vst [vmem:[%s177 + $0x50] sm:$0xff] %v478
        %493 = vst [vmem:[%s177 + $0x58] sm:$0xff] %v483
        %494 = vst [vmem:[%s177 + $0x20] sm:$0xff] 0.0
        %495 = vst [vmem:[%s177 + $0x28] sm:$0xff] 0.0
        %496 = vst [vmem:[%s177 + $0x30] sm:$0xff] 0.0
        %497 = vst [vmem:[%s177 + $0x38] sm:$0xff] 0.0
        %498 = vst [vmem:[%s177 + $0x60] sm:$0xff] 0.0
        %499 = vst [vmem:[%s177 + $0x68] sm:$0xff] 0.0
        %500 = vst [vmem:[%s177 + $0x70] sm:$0xff] 0.0
        %501 = vst [vmem:[%s177 + $0x78] sm:$0xff] 0.0
        %s502 = sand.u32 %s75, 1
        %s503 = scalar_lea.sflag [#allocation4], %s502
        %s504 = sand.u32 %s75, 1
        %s505 = smul.addr %s504, 128
        %s506 = scalar_lea.vmem [#allocation7], %s505
        // Predicated region
        $region37: #{tpu_custom_call.1} parent=27 // pred_check
          %p507 = pneg %p85
        $region38: #{tpu_custom_call.1} parent=27 // pred_check_branch
          %509 = sbr.rel (%p507) target = $region40
        $region39: #{tpu_custom_call.1} parent=27 // pred_region
          %s510 = smul.u32 2, %s20
          %s512 = ssub.s32 2048, 2048
          %513 = vsyncadd %s503, %s512
          %s514 = smul.addr %s510, 8
          %s515 = smul.addr %s514, 128
          %s516 = scalar_lea.hbm %s2, %s515
          %s517 = sshll.u32 %s506, 4
          %s518 = int_to_ptr.vmem [resolvable:$true] %s517
          %523 = dma.vmem_to_hbm [thread:$0]  %s518, 2048, %s516, %s503, 128, 128, 8
        $region40: #{tpu_custom_call.1} parent=27 // pred_fallthru
          _
      $region28: #{tpu_custom_call.1} parent=5 // pred_fallthru
        _
      %p524 = scmp.le.s32.totalorder 2, %s15
      // Predicated region
      $region41: #{tpu_custom_call.1} parent=5 // pred_check
        %p525 = pneg %p524
      $region42: #{tpu_custom_call.1} parent=5 // pred_check_branch
        %527 = sbr.rel (%p525) target = $region44
      $region43: #{tpu_custom_call.1} parent=5 // pred_region
        %s528 = ssub.s32 %s15, 2
        // Predicated region
        $region45: #{tpu_custom_call.1} parent=43 // pred_check
          %p529 = pneg %p91
        $region46: #{tpu_custom_call.1} parent=43 // pred_check_branch
          %531 = sbr.rel (%p529) target = $region48
        $region47: #{tpu_custom_call.1} parent=43 // pred_region
          %s532 = sand.u32 %s76, 1
          %s533 = scalar_lea.sflag [#allocation4], %s532
          %s534 = sand.u32 %s76, 1
          %s535 = smul.addr %s534, 128
          %s536 = scalar_lea.vmem [#allocation7], %s535
          %537 = dma.done %s533, 2048
        $region48: #{tpu_custom_call.1} parent=43 // pred_fallthru
          _
      $region44: #{tpu_custom_call.1} parent=5 // pred_fallthru
        _
    $region6: #{tpu_custom_call.1} parent=1 // loop_footer
      %s19 = sadd.s32 1, %s15
    $region7: #{tpu_custom_call.1} parent=1 // loop_footer_branch
      %14 = sbr.rel target = $region3
    $region8: #{tpu_custom_call.1} parent=1 // loop_exit
      _
    %538 = vsyncpa [#allocation3], 1
    %s539 = scalar_lea.sflag [#allocation3], 1
    %540 = vsyncpa %s539, 1
    %541 = vsyncpa [#allocation6], 1
    %542 = vsyncpa [#allocation4], 1
    %s543 = scalar_lea.sflag [#allocation4], 1
    %544 = vsyncpa %s543, 1

</llo_original>
